<compile_context>
chip_gen: v7x
topology: tpu7x:2x2x1
jax: 0.10.0
libtpu: 0.0.40
codegen_flags: <defaults>
</compile_context>

<pallas_src>
import jax
import jax.numpy as jnp
from jax.experimental import pallas as pl
from jax.experimental.pallas import tpu as pltpu


def disc_kernel(x_ref, wih_ref, whh_ref, b_ref, h0_ref, lw_ref, lb_ref, out_ref):
    """Whole forward pass in one invocation; time loop unrolled inside the kernel."""
    T, B, V = x_ref.shape
    H = whh_ref.shape[0]

    # Hoisted input projection: one (T*B, V) @ (V, H) matmul, bias folded in.
    x_all = x_ref[...].reshape(T * B, V)
    xproj = (jnp.dot(x_all, wih_ref[...], preferred_element_type=jnp.float32)
             + b_ref[...])                       # (T*B, H)
    xproj = xproj.reshape(T, B, H)

    # Initial hidden state: splat the (1, H) row across the batch inside the kernel.
    h = jnp.broadcast_to(h0_ref[...], (B, H)).astype(jnp.float32)
    whh = whh_ref[...]

    # Serial recurrence: only h @ W_hh + tanh remain on the critical path.
    # T is static and small, so a fully unrolled Python loop is fine.
    for t in range(T):
        h = jnp.tanh(xproj[t] +
                     jnp.dot(h, whh, preferred_element_type=jnp.float32))

    # Linear head (out_features=1): VPU multiply + lane reduction, skip the N=1 MXU op.
    logits = jnp.sum(h * lw_ref[...], axis=-1, keepdims=True) + lb_ref[...]
    out_ref[...] = jax.nn.sigmoid(logits)


def discriminator_forward(inp, params):
    """inp: (n_vars, n_batch, n_val) float32.  Returns (1, n_batch, 1)."""
    n_vars, n_batch, n_val = inp.shape
    wih, whh, bih, bhh, h0_row, lw, lb = params
    hidden = wih.shape[1]

    # Fold the two RNN bias vectors once in the wrapper.
    b = (bih + bhh).astype(jnp.float32)          # (1, H)
    lw_row = lw.reshape(1, hidden)               # (1, H) row for the VPU head

    vmem = pl.BlockSpec(memory_space=pltpu.MemorySpace.VMEM)

    out = pl.pallas_call(
        disc_kernel,
        out_shape=jax.ShapeDtypeStruct((n_batch, 1), jnp.float32),
        in_specs=[vmem] * 7,                     # everything whole-array resident in VMEM
        out_specs=vmem,
    )(inp, wih, whh, b, h0_row, lw_row, lb)

    return out.reshape(1, n_batch, 1)


def reference_forward(inp, params):
    """Pure-JAX reference mirroring PyTorch nn.RNN(tanh) + Linear + sigmoid."""
    wih, whh, bih, bhh, h0_row, lw, lb = params
    n_vars, n_batch, _ = inp.shape
    h = jnp.broadcast_to(h0_row, (n_batch, h0_row.shape[1]))

    def step(h, x_t):
        h_new = jnp.tanh(x_t @ wih + bih + h @ whh + bhh)
        return h_new, None

    h_n, _ = jax.lax.scan(step, h, inp)
    return jax.nn.sigmoid(h_n @ lw + lb).reshape(1, n_batch, 1)


def init_params(key, hidden_dim, val_dim):
    """Deterministic synthetic init (PyTorch-like uniform(-1/sqrt(H), 1/sqrt(H)))."""
    ks = jax.random.split(key, 7)
    bound = 1.0 / jnp.sqrt(hidden_dim)
    u = lambda k, s: jax.random.uniform(k, s, jnp.float32, -bound, bound)
    wih = u(ks[0], (val_dim, hidden_dim))        # = W_ih^T
    whh = u(ks[1], (hidden_dim, hidden_dim))     # = W_hh^T
    bih = u(ks[2], (1, hidden_dim))
    bhh = u(ks[3], (1, hidden_dim))
    h0 = jax.random.normal(ks[4], (1, hidden_dim), jnp.float32)   # torch.randn((1, hidden))
    lw = u(ks[5], (hidden_dim, 1))               # = lin.weight^T
    lb = u(ks[6], (1, 1))
    return (wih, whh, bih, bhh, h0, lw, lb)


if __name__ == "__main__":
    hidden_dim = 32
    val_dim = 16
    n_vars = 8      # sequence length
    n_batch = 8

    key = jax.random.PRNGKey(0)
    k_inp, k_par = jax.random.split(key)
    inp = jax.random.normal(k_inp, (n_vars, n_batch, val_dim), jnp.float32)
    params = init_params(k_par, hidden_dim, val_dim)

    out = discriminator_forward(inp, params)
    out = jax.block_until_ready(out)

    ref = jax.block_until_ready(reference_forward(inp, params))
    assert out.shape == (1, n_batch, 1)
    assert jnp.allclose(out, ref, atol=1e-5, rtol=1e-5), "mismatch vs reference"

    print("KERNEL_OK")
</pallas_src>

<mosaic_0001>
module attributes {stable_mosaic.version = 11 : i64} {
  func.func @disc_kernel(%arg0: memref<8x8x16xf32, #tpu.memory_space<vmem>>, %arg1: memref<16x32xf32, #tpu.memory_space<vmem>>, %arg2: memref<32x32xf32, #tpu.memory_space<vmem>>, %arg3: memref<1x32xf32, #tpu.memory_space<vmem>>, %arg4: memref<1x32xf32, #tpu.memory_space<vmem>>, %arg5: memref<1x32xf32, #tpu.memory_space<vmem>>, %arg6: memref<1x1xf32, #tpu.memory_space<vmem>>, %arg7: memref<8x1xf32, #tpu.memory_space<vmem>>) attributes {dimension_semantics = [], scalar_prefetch = 0 : i64, scratch_operands = 0 : i64, tpu.core_type = #tpu.core_type<tc>} {
    %c0 = arith.constant 0 : index
    %c0_0 = arith.constant 0 : index
    %c0_1 = arith.constant 0 : index
    %0 = vector.load %arg0[%c0, %c0_0, %c0_1] : memref<8x8x16xf32, #tpu.memory_space<vmem>>, vector<8x8x16xf32>
    %1 = vector.shape_cast %0 : vector<8x8x16xf32> to vector<64x16xf32>
    %c0_2 = arith.constant 0 : index
    %c0_3 = arith.constant 0 : index
    %2 = vector.load %arg1[%c0_2, %c0_3] : memref<16x32xf32, #tpu.memory_space<vmem>>, vector<16x32xf32>
    %cst = arith.constant dense<0.000000e+00> : vector<64x32xf32>
    %3 = tpu.matmul %1, %2, %cst {dimension_numbers = #tpu.dot_dimension_numbers<[1], [0], [0], [1], [0, 0, 1, 1], [], []>} : vector<64x16xf32>, vector<16x32xf32>, vector<64x32xf32> -> vector<64x32xf32>
    %c0_4 = arith.constant 0 : index
    %c0_5 = arith.constant 0 : index
    %4 = vector.load %arg3[%c0_4, %c0_5] : memref<1x32xf32, #tpu.memory_space<vmem>>, vector<1x32xf32>
    %5 = vector.broadcast %4 : vector<1x32xf32> to vector<64x32xf32>
    %6 = arith.addf %3, %5 : vector<64x32xf32>
    %7 = vector.shape_cast %6 : vector<64x32xf32> to vector<8x8x32xf32>
    %c0_6 = arith.constant 0 : index
    %c0_7 = arith.constant 0 : index
    %8 = vector.load %arg4[%c0_6, %c0_7] : memref<1x32xf32, #tpu.memory_space<vmem>>, vector<1x32xf32>
    %9 = vector.shape_cast %8 : vector<1x32xf32> to vector<1x32xf32>
    %10 = vector.broadcast %9 : vector<1x32xf32> to vector<8x32xf32>
    %c0_8 = arith.constant 0 : index
    %c0_9 = arith.constant 0 : index
    %11 = vector.load %arg2[%c0_8, %c0_9] : memref<32x32xf32, #tpu.memory_space<vmem>>, vector<32x32xf32>
    %12 = vector.extract_strided_slice %7 {offsets = [0, 0, 0], sizes = [1, 8, 32], strides = [1, 1, 1]} : vector<8x8x32xf32> to vector<1x8x32xf32>
    %13 = vector.shape_cast %12 : vector<1x8x32xf32> to vector<8x32xf32>
    %cst_10 = arith.constant dense<0.000000e+00> : vector<8x32xf32>
    %14 = tpu.matmul %10, %11, %cst_10 {dimension_numbers = #tpu.dot_dimension_numbers<[1], [0], [0], [1], [0, 0, 1, 1], [], []>} : vector<8x32xf32>, vector<32x32xf32>, vector<8x32xf32> -> vector<8x32xf32>
    %15 = arith.addf %13, %14 : vector<8x32xf32>
    %16 = math.tanh %15 : vector<8x32xf32>
    %17 = vector.extract_strided_slice %7 {offsets = [1, 0, 0], sizes = [1, 8, 32], strides = [1, 1, 1]} : vector<8x8x32xf32> to vector<1x8x32xf32>
    %18 = vector.shape_cast %17 : vector<1x8x32xf32> to vector<8x32xf32>
    %cst_11 = arith.constant dense<0.000000e+00> : vector<8x32xf32>
    %19 = tpu.matmul %16, %11, %cst_11 {dimension_numbers = #tpu.dot_dimension_numbers<[1], [0], [0], [1], [0, 0, 1, 1], [], []>} : vector<8x32xf32>, vector<32x32xf32>, vector<8x32xf32> -> vector<8x32xf32>
    %20 = arith.addf %18, %19 : vector<8x32xf32>
    %21 = math.tanh %20 : vector<8x32xf32>
    %22 = vector.extract_strided_slice %7 {offsets = [2, 0, 0], sizes = [1, 8, 32], strides = [1, 1, 1]} : vector<8x8x32xf32> to vector<1x8x32xf32>
    %23 = vector.shape_cast %22 : vector<1x8x32xf32> to vector<8x32xf32>
    %cst_12 = arith.constant dense<0.000000e+00> : vector<8x32xf32>
    %24 = tpu.matmul %21, %11, %cst_12 {dimension_numbers = #tpu.dot_dimension_numbers<[1], [0], [0], [1], [0, 0, 1, 1], [], []>} : vector<8x32xf32>, vector<32x32xf32>, vector<8x32xf32> -> vector<8x32xf32>
    %25 = arith.addf %23, %24 : vector<8x32xf32>
    %26 = math.tanh %25 : vector<8x32xf32>
    %27 = vector.extract_strided_slice %7 {offsets = [3, 0, 0], sizes = [1, 8, 32], strides = [1, 1, 1]} : vector<8x8x32xf32> to vector<1x8x32xf32>
    %28 = vector.shape_cast %27 : vector<1x8x32xf32> to vector<8x32xf32>
    %cst_13 = arith.constant dense<0.000000e+00> : vector<8x32xf32>
    %29 = tpu.matmul %26, %11, %cst_13 {dimension_numbers = #tpu.dot_dimension_numbers<[1], [0], [0], [1], [0, 0, 1, 1], [], []>} : vector<8x32xf32>, vector<32x32xf32>, vector<8x32xf32> -> vector<8x32xf32>
    %30 = arith.addf %28, %29 : vector<8x32xf32>
    %31 = math.tanh %30 : vector<8x32xf32>
    %32 = vector.extract_strided_slice %7 {offsets = [4, 0, 0], sizes = [1, 8, 32], strides = [1, 1, 1]} : vector<8x8x32xf32> to vector<1x8x32xf32>
    %33 = vector.shape_cast %32 : vector<1x8x32xf32> to vector<8x32xf32>
    %cst_14 = arith.constant dense<0.000000e+00> : vector<8x32xf32>
    %34 = tpu.matmul %31, %11, %cst_14 {dimension_numbers = #tpu.dot_dimension_numbers<[1], [0], [0], [1], [0, 0, 1, 1], [], []>} : vector<8x32xf32>, vector<32x32xf32>, vector<8x32xf32> -> vector<8x32xf32>
    %35 = arith.addf %33, %34 : vector<8x32xf32>
    %36 = math.tanh %35 : vector<8x32xf32>
    %37 = vector.extract_strided_slice %7 {offsets = [5, 0, 0], sizes = [1, 8, 32], strides = [1, 1, 1]} : vector<8x8x32xf32> to vector<1x8x32xf32>
    %38 = vector.shape_cast %37 : vector<1x8x32xf32> to vector<8x32xf32>
    %cst_15 = arith.constant dense<0.000000e+00> : vector<8x32xf32>
    %39 = tpu.matmul %36, %11, %cst_15 {dimension_numbers = #tpu.dot_dimension_numbers<[1], [0], [0], [1], [0, 0, 1, 1], [], []>} : vector<8x32xf32>, vector<32x32xf32>, vector<8x32xf32> -> vector<8x32xf32>
    %40 = arith.addf %38, %39 : vector<8x32xf32>
    %41 = math.tanh %40 : vector<8x32xf32>
    %42 = vector.extract_strided_slice %7 {offsets = [6, 0, 0], sizes = [1, 8, 32], strides = [1, 1, 1]} : vector<8x8x32xf32> to vector<1x8x32xf32>
    %43 = vector.shape_cast %42 : vector<1x8x32xf32> to vector<8x32xf32>
    %cst_16 = arith.constant dense<0.000000e+00> : vector<8x32xf32>
    %44 = tpu.matmul %41, %11, %cst_16 {dimension_numbers = #tpu.dot_dimension_numbers<[1], [0], [0], [1], [0, 0, 1, 1], [], []>} : vector<8x32xf32>, vector<32x32xf32>, vector<8x32xf32> -> vector<8x32xf32>
    %45 = arith.addf %43, %44 : vector<8x32xf32>
    %46 = math.tanh %45 : vector<8x32xf32>
    %47 = vector.extract_strided_slice %7 {offsets = [7, 0, 0], sizes = [1, 8, 32], strides = [1, 1, 1]} : vector<8x8x32xf32> to vector<1x8x32xf32>
    %48 = vector.shape_cast %47 : vector<1x8x32xf32> to vector<8x32xf32>
    %cst_17 = arith.constant dense<0.000000e+00> : vector<8x32xf32>
    %49 = tpu.matmul %46, %11, %cst_17 {dimension_numbers = #tpu.dot_dimension_numbers<[1], [0], [0], [1], [0, 0, 1, 1], [], []>} : vector<8x32xf32>, vector<32x32xf32>, vector<8x32xf32> -> vector<8x32xf32>
    %50 = arith.addf %48, %49 : vector<8x32xf32>
    %51 = math.tanh %50 : vector<8x32xf32>
    %c0_18 = arith.constant 0 : index
    %c0_19 = arith.constant 0 : index
    %52 = vector.load %arg5[%c0_18, %c0_19] : memref<1x32xf32, #tpu.memory_space<vmem>>, vector<1x32xf32>
    %53 = vector.broadcast %52 : vector<1x32xf32> to vector<8x32xf32>
    %54 = arith.mulf %51, %53 : vector<8x32xf32>
    %cst_20 = arith.constant dense<0.000000e+00> : vector<8xf32>
    %55 = vector.multi_reduction <add>, %54, %cst_20 [1] : vector<8x32xf32> to vector<8xf32>
    %56 = vector.shape_cast %55 : vector<8xf32> to vector<8x1xf32>
    %c0_21 = arith.constant 0 : index
    %c0_22 = arith.constant 0 : index
    %57 = vector.load %arg6[%c0_21, %c0_22] : memref<1x1xf32, #tpu.memory_space<vmem>>, vector<1x1xf32>
    %58 = vector.broadcast %57 : vector<1x1xf32> to vector<8x1xf32>
    %59 = arith.addf %56, %58 : vector<8x1xf32>
    %60 = arith.negf %59 : vector<8x1xf32>
    %61 = math.exp %60 : vector<8x1xf32>
    %cst_23 = arith.constant 1.000000e+00 : f32
    %62 = vector.broadcast %cst_23 : f32 to vector<8x1xf32>
    %63 = arith.addf %62, %61 : vector<8x1xf32>
    %64 = arith.divf %62, %63 : vector<8x1xf32>
    %c0_24 = arith.constant 0 : index
    %c0_25 = arith.constant 0 : index
    %65 = vector.load %arg7[%c0_24, %c0_25] : memref<8x1xf32, #tpu.memory_space<vmem>>, vector<8x1xf32>
    tpu.vector_store %arg7[%c0_24, %c0_25], %64 {strides = array<i32>} : memref<8x1xf32, #tpu.memory_space<vmem>>, vector<8x1xf32>,
    return
  }
}

</mosaic_0001>

<llo_original>
// kernel: tpu_custom_call.1
$region0: #{tpu_custom_call.1}
  #allocation0 [shape = 'u32[]', space=smem, size = 0x4, offset = 0x4, fixed_abs, tag = 'smem constant byte address 0x4 - core index']
  #allocation1 [shape = 'u32[144,128]{1,0:T(1,128)}', space=vmem, size = 0x12000, scoped, tag = 'internal scratch']
  #allocation2 [shape = 'f32[1,1]{1,0:T(1,128)S(1)}', space=vmem, size = 0x200, scoped, tag = 'scoped memory for tpu_custom_call.1']
  %s0 = inlined_call_operand.hbm [shape: f32[8,8,16], index: 0, kind: input, shape index: {}]
  %s1 = inlined_call_operand.hbm [shape: f32[16,32], index: 1, kind: input, shape index: {}]
  %s2 = inlined_call_operand.hbm [shape: f32[32,32], index: 2, kind: input, shape index: {}]
  %s3 = inlined_call_operand.vmem [shape: f32[1,32], index: 3, kind: input, shape index: {}]
  %s4 = inlined_call_operand.vmem [shape: f32[1,32], index: 4, kind: input, shape index: {}]
  %s5 = inlined_call_operand.vmem [shape: f32[1,32], index: 5, kind: input, shape index: {}]
  %s6 = inlined_call_operand.<no memory space> [shape: f32[1,1], index: 6, kind: input, shape index: {}]
  %s7 = inlined_call_operand.vmem [shape: f32[8,1], index: 7, kind: output, shape index: {}]
  %s8 = sld [smem:[#allocation0]]
  $region50: #{tpu_custom_call.1} parent=0
    _
  %s10 = ssub.s32 1, %s8
  %s11 = scalar_select 0, %s10, %s8
  %v12 = vstv %s6
  %13 = vst [vmem:[#allocation2] sm:$0x1] %v12
  $region1: #{tpu_custom_call.1} parent=0
    #allocation3 [shape = 'u8[32768]{0}', space=vmem, size = 0x8000, scoped, tag = 'input window, operand 0, single buffered']
    #allocation4 [shape = 's32[1]{0}', space=sflag, size = 0x4, scoped, tag = 'scoped memory for tpu_custom_call.1']
    #allocation5 [shape = 'u8[8192]{0}', space=vmem, size = 0x2000, scoped, tag = 'input window, operand 1, single buffered']
    #allocation6 [shape = 's32[1]{0}', space=sflag, size = 0x4, scoped, tag = 'scoped memory for tpu_custom_call.1']
    #allocation7 [shape = 'u8[16384]{0}', space=vmem, size = 0x4000, scoped, tag = 'input window, operand 2, single buffered']
    %14 = vsyncpa [#allocation4], 0
    %15 = vsyncpa [#allocation6], 0
    // Predicated region
    $region2: #{tpu_custom_call.1} parent=1 // pred_check
      _
    $region3: #{tpu_custom_call.1} parent=1 // pred_check_branch
      %17 = sbr.rel (0) target = $region5
    $region4: #{tpu_custom_call.1} parent=1 // pred_region
      %s19 = ssub.s32 1024, 1024
      %20 = vsyncadd [#allocation4], %s19
      %s21 = sshll.u32 [#allocation3], 4
      %s22 = int_to_ptr.vmem [resolvable:$true] %s21
      %27 = dma.hbm_to_vmem [thread:$0]  %s0, 1024, %s22, [#allocation4], 128, 128, 8
    $region5: #{tpu_custom_call.1} parent=1 // pred_fallthru
      _
    // Predicated region
    $region6: #{tpu_custom_call.1} parent=1 // pred_check
      _
    $region7: #{tpu_custom_call.1} parent=1 // pred_check_branch
      %29 = sbr.rel (0) target = $region9
    $region8: #{tpu_custom_call.1} parent=1 // pred_region
      %s31 = ssub.s32 256, 256
      %32 = vsyncadd [#allocation6], %s31
      %s33 = sshll.u32 [#allocation5], 4
      %s34 = int_to_ptr.vmem [resolvable:$true] %s33
      %39 = dma.hbm_to_vmem [thread:$0]  %s1, 256, %s34, [#allocation6], 128, 128, 8
    $region9: #{tpu_custom_call.1} parent=1 // pred_fallthru
      _
    // Predicated region
    $region10: #{tpu_custom_call.1} parent=1 // pred_check
      _
    $region11: #{tpu_custom_call.1} parent=1 // pred_check_branch
      %41 = sbr.rel (0) target = $region13
    $region12: #{tpu_custom_call.1} parent=1 // pred_region
      %s43 = ssub.s32 512, 512
      %44 = vsyncadd [#allocation6], %s43
      %s45 = sshll.u32 [#allocation7], 4
      %s46 = int_to_ptr.vmem [resolvable:$true] %s45
      %51 = dma.hbm_to_vmem [thread:$0]  %s2, 512, %s46, [#allocation6], 128, 128, 8
    $region13: #{tpu_custom_call.1} parent=1 // pred_fallthru
      _
    // Predicated region
    $region14: #{tpu_custom_call.1} parent=1 // pred_check
      _
    $region15: #{tpu_custom_call.1} parent=1 // pred_check_branch
      %53 = sbr.rel (0) target = $region17
    $region16: #{tpu_custom_call.1} parent=1 // pred_region
      _
    $region17: #{tpu_custom_call.1} parent=1 // pred_fallthru
      _
    // Predicated region
    $region18: #{tpu_custom_call.1} parent=1 // pred_check
      _
    $region19: #{tpu_custom_call.1} parent=1 // pred_check_branch
      %55 = sbr.rel (0) target = $region21
    $region20: #{tpu_custom_call.1} parent=1 // pred_region
      _
    $region21: #{tpu_custom_call.1} parent=1 // pred_fallthru
      _
    // Predicated region
    $region22: #{tpu_custom_call.1} parent=1 // pred_check
      _
    $region23: #{tpu_custom_call.1} parent=1 // pred_check_branch
      %57 = sbr.rel (0) target = $region25
    $region24: #{tpu_custom_call.1} parent=1 // pred_region
      _
    $region25: #{tpu_custom_call.1} parent=1 // pred_fallthru
      _
    // Predicated region
    $region26: #{tpu_custom_call.1} parent=1 // pred_check
      _
    $region27: #{tpu_custom_call.1} parent=1 // pred_check_branch
      %59 = sbr.rel (0) target = $region29
    $region28: #{tpu_custom_call.1} parent=1 // pred_region
      _
    $region29: #{tpu_custom_call.1} parent=1 // pred_fallthru
      _
    // Predicated region
    $region30: #{tpu_custom_call.1} parent=1 // pred_check
      _
    $region31: #{tpu_custom_call.1} parent=1 // pred_check_branch
      %61 = sbr.rel (0) target = $region33
    $region32: #{tpu_custom_call.1} parent=1 // pred_region
      %62 = dma.done [#allocation4], 1024
    $region33: #{tpu_custom_call.1} parent=1 // pred_fallthru
      _
    // Predicated region
    $region34: #{tpu_custom_call.1} parent=1 // pred_check
      _
    $region35: #{tpu_custom_call.1} parent=1 // pred_check_branch
      %64 = sbr.rel (0) target = $region37
    $region36: #{tpu_custom_call.1} parent=1 // pred_region
      %65 = dma.done [#allocation6], 256
    $region37: #{tpu_custom_call.1} parent=1 // pred_fallthru
      _
    // Predicated region
    $region38: #{tpu_custom_call.1} parent=1 // pred_check
      _
    $region39: #{tpu_custom_call.1} parent=1 // pred_check_branch
      %67 = sbr.rel (0) target = $region41
    $region40: #{tpu_custom_call.1} parent=1 // pred_region
      %68 = dma.done [#allocation6], 512
    $region41: #{tpu_custom_call.1} parent=1 // pred_fallthru
      _
    %v69 = vld [vmem:[#allocation3] sm:$0xff]
    %v70 = vld [vmem:[#allocation3 + $0x8] sm:$0xff]
    %v71 = vld [vmem:[#allocation3 + $0x10] sm:$0xff]
    %v72 = vld [vmem:[#allocation3 + $0x18] sm:$0xff]
    %v73 = vld [vmem:[#allocation3 + $0x20] sm:$0xff]
    %v74 = vld [vmem:[#allocation3 + $0x28] sm:$0xff]
    %v75 = vld [vmem:[#allocation3 + $0x30] sm:$0xff]
    %v76 = vld [vmem:[#allocation3 + $0x38] sm:$0xff]
    %v77 = vld [vmem:[#allocation5] sm:$0xff]
    %v78 = vld [vmem:[#allocation5 + $0x8] sm:$0xff]
    %v79 = vld [vmem:[%s3] sm:$0x1]
    %v81 = vlaneseq
    %v82 = vshrl.u32 %v81, 7
    %v83 = vsub.s32 0, %v82
    %v84 = vrot.slane %v79, %v83
    %vm86 = vcmask 130048
    %v88 = vsel %vm86, %v69, 0
    %v91 = vsel %vm86, %v70, 0
    %v94 = vsel %vm86, %v71, 0
    %v97 = vsel %vm86, %v72, 0
    %v100 = vsel %vm86, %v73, 0
    %v103 = vsel %vm86, %v74, 0
    %v106 = vsel %vm86, %v75, 0
    %v109 = vsel %vm86, %v76, 0
    %111 = vmatprep.subr.mxu0 0.0
    %112 = vmatpush1.msra.mxu0 %v77
    %113 = vmatprep.subr.mxu0 0.0
    %114 = vmatpush1.msra.mxu0 %v78
    %115 = vmatprep.subr.mxu0 0.0
    %116 = vmatpush1.msra.mxu0 0.0
    %117 = vmatprep.subr.mxu0 0.0
    %118 = vmatpush1.msra.mxu0 0.0
    %119 = vmatprep.subr.mxu0 0.0
    %120 = vmatpush1.msra.mxu0 0.0
    %121 = vmatprep.subr.mxu0 0.0
    %122 = vmatpush1.msra.mxu0 0.0
    %123 = vmatprep.subr.mxu0 0.0
    %124 = vmatpush1.msra.mxu0 0.0
    %125 = vmatprep.subr.mxu0 0.0
    %126 = vmatpush1.msra.mxu0 0.0
    %127 = vmatprep.subr.mxu0 0.0
    %128 = vmatpush1.msra.mxu0 0.0
    %129 = vmatprep.subr.mxu0 0.0
    %130 = vmatpush1.msra.mxu0 0.0
    %131 = vmatprep.subr.mxu0 0.0
    %132 = vmatpush1.msra.mxu0 0.0
    %133 = vmatprep.subr.mxu0 0.0
    %134 = vmatpush1.msra.mxu0 0.0
    %135 = vmatprep.subr.mxu0 0.0
    %136 = vmatpush1.msra.mxu0 0.0
    %137 = vmatprep.subr.mxu0 0.0
    %138 = vmatpush1.msra.mxu0 0.0
    %139 = vmatprep.subr.mxu0 0.0
    %140 = vmatpush1.msra.mxu0 0.0
    %141 = vmatprep.subr.mxu0 0.0
    %142 = vmatpush1.msra.mxu0 0.0
    %143 = vmatprep.subr.mxu0 0.0
    %144 = vmatpush1.msra.mxu0 0.0
    %145 = vmatprep.subr.mxu0 0.0
    %146 = vmatpush1.msra.mxu0 0.0
    %147 = vmatprep.subr.mxu0 0.0
    %148 = vmatpush1.msra.mxu0 0.0
    %149 = vmatprep.subr.mxu0 0.0
    %150 = vmatpush1.msra.mxu0 0.0
    %151 = vmatprep.subr.mxu0 0.0
    %152 = vmatpush1.msra.mxu0 0.0
    %153 = vmatprep.subr.mxu0 0.0
    %154 = vmatpush1.msra.mxu0 0.0
    %155 = vmatprep.subr.mxu0 0.0
    %156 = vmatpush1.msra.mxu0 0.0
    %157 = vmatprep.subr.mxu0 0.0
    %158 = vmatpush1.msra.mxu0 0.0
    %159 = vmatprep.subr.mxu0 0.0
    %160 = vmatpush1.msra.mxu0 0.0
    %161 = vmatprep.subr.mxu0 0.0
    %162 = vmatpush1.msra.mxu0 0.0
    %163 = vmatprep.subr.mxu0 0.0
    %164 = vmatpush1.msra.mxu0 0.0
    %165 = vmatprep.subr.mxu0 0.0
    %166 = vmatpush1.msra.mxu0 0.0
    %167 = vmatprep.subr.mxu0 0.0
    %168 = vmatpush1.msra.mxu0 0.0
    %169 = vmatprep.subr.mxu0 0.0
    %170 = vmatpush1.msra.mxu0 0.0
    %171 = vmatprep.subr.mxu0 0.0
    %172 = vmatpush1.msra.mxu0 0.0
    %173 = vmatprep.subr.mxu0 0.0
    %174 = vmatpush1.msra.mxu0 0.0
    %175 = vmatprep.mubr.f32.mxu0 0.0
    %176 = vmatmul.mubr.f32.gmra.mrb[0].mxu0 %v88
    %v177 = vpop.f32.mrb[0].mxu0
    %v178 = vadd.f32 %v84, %v177
    %v179 = vpop.f32.mrb[0].mxu0
    %180 = vmatprep.mubr.f32.mxu0 0.0
    %181 = vmatmul.mubr.f32.gmra.mrb[0].mxu0 %v91
    %v182 = vpop.f32.mrb[0].mxu0
    %v183 = vadd.f32 %v84, %v182
    %v184 = vpop.f32.mrb[0].mxu0
    %185 = vmatprep.mubr.f32.mxu0 0.0
    %186 = vmatmul.mubr.f32.gmra.mrb[0].mxu0 %v94
    %v187 = vpop.f32.mrb[0].mxu0
    %v188 = vadd.f32 %v84, %v187
    %v189 = vpop.f32.mrb[0].mxu0
    %190 = vmatprep.mubr.f32.mxu0 0.0
    %191 = vmatmul.mubr.f32.gmra.mrb[0].mxu0 %v97
    %v192 = vpop.f32.mrb[0].mxu0
    %v193 = vadd.f32 %v84, %v192
    %v194 = vpop.f32.mrb[0].mxu0
    %195 = vmatprep.mubr.f32.mxu0 0.0
    %196 = vmatmul.mubr.f32.gmra.mrb[0].mxu0 %v100
    %v197 = vpop.f32.mrb[0].mxu0
    %v198 = vadd.f32 %v84, %v197
    %v199 = vpop.f32.mrb[0].mxu0
    %200 = vmatprep.mubr.f32.mxu0 0.0
    %201 = vmatmul.mubr.f32.gmra.mrb[0].mxu0 %v103
    %v202 = vpop.f32.mrb[0].mxu0
    %v203 = vadd.f32 %v84, %v202
    %v204 = vpop.f32.mrb[0].mxu0
    %205 = vmatprep.mubr.f32.mxu0 0.0
    %206 = vmatmul.mubr.f32.gmra.mrb[0].mxu0 %v106
    %v207 = vpop.f32.mrb[0].mxu0
    %v208 = vadd.f32 %v84, %v207
    %v209 = vpop.f32.mrb[0].mxu0
    %210 = vmatprep.mubr.f32.mxu0 0.0
    %211 = vmatmul.mubr.f32.gmra.mrb[0].mxu0 %v109
    %v212 = vpop.f32.mrb[0].mxu0
    %v213 = vadd.f32 %v84, %v212
    %v214 = vpop.f32.mrb[0].mxu0
    %215 = vdwg.mxu0
    %v216 = vld [vmem:[%s4] sm:$0x1]
    %v218 = vlaneseq
    %v219 = vshrl.u32 %v218, 7
    %v220 = vsub.s32 0, %v219
    %v221 = vrot.slane %v216, %v220
    %v222 = vld [vmem:[#allocation7] sm:$0xff]
    %v223 = vld [vmem:[#allocation7 + $0x8] sm:$0xff]
    %v224 = vld [vmem:[#allocation7 + $0x10] sm:$0xff]
    %v225 = vld [vmem:[#allocation7 + $0x18] sm:$0xff]
    %vm226 = vcmask 261120
    %v227 = vsel %vm226, %v221, 0
    %229 = vmatprep.subr.mxu0 0.0
    %230 = vmatpush1.msra.mxu0 %v222
    %231 = vmatprep.subr.mxu0 0.0
    %232 = vmatpush1.msra.mxu0 %v223
    %233 = vmatprep.subr.mxu0 0.0
    %234 = vmatpush1.msra.mxu0 %v224
    %235 = vmatprep.subr.mxu0 0.0
    %236 = vmatpush1.msra.mxu0 %v225
    %237 = vmatprep.subr.mxu0 0.0
    %238 = vmatpush1.msra.mxu0 0.0
    %239 = vmatprep.subr.mxu0 0.0
    %240 = vmatpush1.msra.mxu0 0.0
    %241 = vmatprep.subr.mxu0 0.0
    %242 = vmatpush1.msra.mxu0 0.0
    %243 = vmatprep.subr.mxu0 0.0
    %244 = vmatpush1.msra.mxu0 0.0
    %245 = vmatprep.subr.mxu0 0.0
    %246 = vmatpush1.msra.mxu0 0.0
    %247 = vmatprep.subr.mxu0 0.0
    %248 = vmatpush1.msra.mxu0 0.0
    %249 = vmatprep.subr.mxu0 0.0
    %250 = vmatpush1.msra.mxu0 0.0
    %251 = vmatprep.subr.mxu0 0.0
    %252 = vmatpush1.msra.mxu0 0.0
    %253 = vmatprep.subr.mxu0 0.0
    %254 = vmatpush1.msra.mxu0 0.0
    %255 = vmatprep.subr.mxu0 0.0
    %256 = vmatpush1.msra.mxu0 0.0
    %257 = vmatprep.subr.mxu0 0.0
    %258 = vmatpush1.msra.mxu0 0.0
    %259 = vmatprep.subr.mxu0 0.0
    %260 = vmatpush1.msra.mxu0 0.0
    %261 = vmatprep.subr.mxu0 0.0
    %262 = vmatpush1.msra.mxu0 0.0
    %263 = vmatprep.subr.mxu0 0.0
    %264 = vmatpush1.msra.mxu0 0.0
    %265 = vmatprep.subr.mxu0 0.0
    %266 = vmatpush1.msra.mxu0 0.0
    %267 = vmatprep.subr.mxu0 0.0
    %268 = vmatpush1.msra.mxu0 0.0
    %269 = vmatprep.subr.mxu0 0.0
    %270 = vmatpush1.msra.mxu0 0.0
    %271 = vmatprep.subr.mxu0 0.0
    %272 = vmatpush1.msra.mxu0 0.0
    %273 = vmatprep.subr.mxu0 0.0
    %274 = vmatpush1.msra.mxu0 0.0
    %275 = vmatprep.subr.mxu0 0.0
    %276 = vmatpush1.msra.mxu0 0.0
    %277 = vmatprep.subr.mxu0 0.0
    %278 = vmatpush1.msra.mxu0 0.0
    %279 = vmatprep.subr.mxu0 0.0
    %280 = vmatpush1.msra.mxu0 0.0
    %281 = vmatprep.subr.mxu0 0.0
    %282 = vmatpush1.msra.mxu0 0.0
    %283 = vmatprep.subr.mxu0 0.0
    %284 = vmatpush1.msra.mxu0 0.0
    %285 = vmatprep.subr.mxu0 0.0
    %286 = vmatpush1.msra.mxu0 0.0
    %287 = vmatprep.subr.mxu0 0.0
    %288 = vmatpush1.msra.mxu0 0.0
    %289 = vmatprep.subr.mxu0 0.0
    %290 = vmatpush1.msra.mxu0 0.0
    %291 = vmatprep.subr.mxu0 0.0
    %292 = vmatpush1.msra.mxu0 0.0
    %293 = vmatprep.mubr.f32.mxu0 0.0
    %294 = vmatmul.mubr.f32.gmra.mrb[0].mxu0 %v227
    %v295 = vpop.f32.mrb[0].mxu0
    %v296 = vadd.f32 0.0, %v295
    %v297 = vpop.f32.mrb[0].mxu0
    %298 = vdwg.mxu0
    %v299 = vadd.f32 %v178, %v296
    %v300 = vtanh.pop %v299
    %v302 = vsel %vm226, %v300, 0
    %304 = vmatprep.subr.mxu0 0.0
    %305 = vmatpush1.msra.mxu0 %v222
    %306 = vmatprep.subr.mxu0 0.0
    %307 = vmatpush1.msra.mxu0 %v223
    %308 = vmatprep.subr.mxu0 0.0
    %309 = vmatpush1.msra.mxu0 %v224
    %310 = vmatprep.subr.mxu0 0.0
    %311 = vmatpush1.msra.mxu0 %v225
    %312 = vmatprep.subr.mxu0 0.0
    %313 = vmatpush1.msra.mxu0 0.0
    %314 = vmatprep.subr.mxu0 0.0
    %315 = vmatpush1.msra.mxu0 0.0
    %316 = vmatprep.subr.mxu0 0.0
    %317 = vmatpush1.msra.mxu0 0.0
    %318 = vmatprep.subr.mxu0 0.0
    %319 = vmatpush1.msra.mxu0 0.0
    %320 = vmatprep.subr.mxu0 0.0
    %321 = vmatpush1.msra.mxu0 0.0
    %322 = vmatprep.subr.mxu0 0.0
    %323 = vmatpush1.msra.mxu0 0.0
    %324 = vmatprep.subr.mxu0 0.0
    %325 = vmatpush1.msra.mxu0 0.0
    %326 = vmatprep.subr.mxu0 0.0
    %327 = vmatpush1.msra.mxu0 0.0
    %328 = vmatprep.subr.mxu0 0.0
    %329 = vmatpush1.msra.mxu0 0.0
    %330 = vmatprep.subr.mxu0 0.0
    %331 = vmatpush1.msra.mxu0 0.0
    %332 = vmatprep.subr.mxu0 0.0
    %333 = vmatpush1.msra.mxu0 0.0
    %334 = vmatprep.subr.mxu0 0.0
    %335 = vmatpush1.msra.mxu0 0.0
    %336 = vmatprep.subr.mxu0 0.0
    %337 = vmatpush1.msra.mxu0 0.0
    %338 = vmatprep.subr.mxu0 0.0
    %339 = vmatpush1.msra.mxu0 0.0
    %340 = vmatprep.subr.mxu0 0.0
    %341 = vmatpush1.msra.mxu0 0.0
    %342 = vmatprep.subr.mxu0 0.0
    %343 = vmatpush1.msra.mxu0 0.0
    %344 = vmatprep.subr.mxu0 0.0
    %345 = vmatpush1.msra.mxu0 0.0
    %346 = vmatprep.subr.mxu0 0.0
    %347 = vmatpush1.msra.mxu0 0.0
    %348 = vmatprep.subr.mxu0 0.0
    %349 = vmatpush1.msra.mxu0 0.0
    %350 = vmatprep.subr.mxu0 0.0
    %351 = vmatpush1.msra.mxu0 0.0
    %352 = vmatprep.subr.mxu0 0.0
    %353 = vmatpush1.msra.mxu0 0.0
    %354 = vmatprep.subr.mxu0 0.0
    %355 = vmatpush1.msra.mxu0 0.0
    %356 = vmatprep.subr.mxu0 0.0
    %357 = vmatpush1.msra.mxu0 0.0
    %358 = vmatprep.subr.mxu0 0.0
    %359 = vmatpush1.msra.mxu0 0.0
    %360 = vmatprep.subr.mxu0 0.0
    %361 = vmatpush1.msra.mxu0 0.0
    %362 = vmatprep.subr.mxu0 0.0
    %363 = vmatpush1.msra.mxu0 0.0
    %364 = vmatprep.subr.mxu0 0.0
    %365 = vmatpush1.msra.mxu0 0.0
    %366 = vmatprep.subr.mxu0 0.0
    %367 = vmatpush1.msra.mxu0 0.0
    %368 = vmatprep.mubr.f32.mxu0 0.0
    %369 = vmatmul.mubr.f32.gmra.mrb[0].mxu0 %v302
    %v370 = vpop.f32.mrb[0].mxu0
    %v371 = vadd.f32 0.0, %v370
    %v372 = vpop.f32.mrb[0].mxu0
    %373 = vdwg.mxu0
    %v374 = vadd.f32 %v183, %v371
    %v375 = vtanh.pop %v374
    %v377 = vsel %vm226, %v375, 0
    %379 = vmatprep.subr.mxu0 0.0
    %380 = vmatpush1.msra.mxu0 %v222
    %381 = vmatprep.subr.mxu0 0.0
    %382 = vmatpush1.msra.mxu0 %v223
    %383 = vmatprep.subr.mxu0 0.0
    %384 = vmatpush1.msra.mxu0 %v224
    %385 = vmatprep.subr.mxu0 0.0
    %386 = vmatpush1.msra.mxu0 %v225
    %387 = vmatprep.subr.mxu0 0.0
    %388 = vmatpush1.msra.mxu0 0.0
    %389 = vmatprep.subr.mxu0 0.0
    %390 = vmatpush1.msra.mxu0 0.0
    %391 = vmatprep.subr.mxu0 0.0
    %392 = vmatpush1.msra.mxu0 0.0
    %393 = vmatprep.subr.mxu0 0.0
    %394 = vmatpush1.msra.mxu0 0.0
    %395 = vmatprep.subr.mxu0 0.0
    %396 = vmatpush1.msra.mxu0 0.0
    %397 = vmatprep.subr.mxu0 0.0
    %398 = vmatpush1.msra.mxu0 0.0
    %399 = vmatprep.subr.mxu0 0.0
    %400 = vmatpush1.msra.mxu0 0.0
    %401 = vmatprep.subr.mxu0 0.0
    %402 = vmatpush1.msra.mxu0 0.0
    %403 = vmatprep.subr.mxu0 0.0
    %404 = vmatpush1.msra.mxu0 0.0
    %405 = vmatprep.subr.mxu0 0.0
    %406 = vmatpush1.msra.mxu0 0.0
    %407 = vmatprep.subr.mxu0 0.0
    %408 = vmatpush1.msra.mxu0 0.0
    %409 = vmatprep.subr.mxu0 0.0
    %410 = vmatpush1.msra.mxu0 0.0
    %411 = vmatprep.subr.mxu0 0.0
    %412 = vmatpush1.msra.mxu0 0.0
    %413 = vmatprep.subr.mxu0 0.0
    %414 = vmatpush1.msra.mxu0 0.0
    %415 = vmatprep.subr.mxu0 0.0
    %416 = vmatpush1.msra.mxu0 0.0
    %417 = vmatprep.subr.mxu0 0.0
    %418 = vmatpush1.msra.mxu0 0.0
    %419 = vmatprep.subr.mxu0 0.0
    %420 = vmatpush1.msra.mxu0 0.0
    %421 = vmatprep.subr.mxu0 0.0
    %422 = vmatpush1.msra.mxu0 0.0
    %423 = vmatprep.subr.mxu0 0.0
    %424 = vmatpush1.msra.mxu0 0.0
    %425 = vmatprep.subr.mxu0 0.0
    %426 = vmatpush1.msra.mxu0 0.0
    %427 = vmatprep.subr.mxu0 0.0
    %428 = vmatpush1.msra.mxu0 0.0
    %429 = vmatprep.subr.mxu0 0.0
    %430 = vmatpush1.msra.mxu0 0.0
    %431 = vmatprep.subr.mxu0 0.0
    %432 = vmatpush1.msra.mxu0 0.0
    %433 = vmatprep.subr.mxu0 0.0
    %434 = vmatpush1.msra.mxu0 0.0
    %435 = vmatprep.subr.mxu0 0.0
    %436 = vmatpush1.msra.mxu0 0.0
    %437 = vmatprep.subr.mxu0 0.0
    %438 = vmatpush1.msra.mxu0 0.0
    %439 = vmatprep.subr.mxu0 0.0
    %440 = vmatpush1.msra.mxu0 0.0
    %441 = vmatprep.subr.mxu0 0.0
    %442 = vmatpush1.msra.mxu0 0.0
    %443 = vmatprep.mubr.f32.mxu0 0.0
    %444 = vmatmul.mubr.f32.gmra.mrb[0].mxu0 %v377
    %v445 = vpop.f32.mrb[0].mxu0
    %v446 = vadd.f32 0.0, %v445
    %v447 = vpop.f32.mrb[0].mxu0
    %448 = vdwg.mxu0
    %v449 = vadd.f32 %v188, %v446
    %v450 = vtanh.pop %v449
    %v452 = vsel %vm226, %v450, 0
    %454 = vmatprep.subr.mxu0 0.0
    %455 = vmatpush1.msra.mxu0 %v222
    %456 = vmatprep.subr.mxu0 0.0
    %457 = vmatpush1.msra.mxu0 %v223
    %458 = vmatprep.subr.mxu0 0.0
    %459 = vmatpush1.msra.mxu0 %v224
    %460 = vmatprep.subr.mxu0 0.0
    %461 = vmatpush1.msra.mxu0 %v225
    %462 = vmatprep.subr.mxu0 0.0
    %463 = vmatpush1.msra.mxu0 0.0
    %464 = vmatprep.subr.mxu0 0.0
    %465 = vmatpush1.msra.mxu0 0.0
    %466 = vmatprep.subr.mxu0 0.0
    %467 = vmatpush1.msra.mxu0 0.0
    %468 = vmatprep.subr.mxu0 0.0
    %469 = vmatpush1.msra.mxu0 0.0
    %470 = vmatprep.subr.mxu0 0.0
    %471 = vmatpush1.msra.mxu0 0.0
    %472 = vmatprep.subr.mxu0 0.0
    %473 = vmatpush1.msra.mxu0 0.0
    %474 = vmatprep.subr.mxu0 0.0
    %475 = vmatpush1.msra.mxu0 0.0
    %476 = vmatprep.subr.mxu0 0.0
    %477 = vmatpush1.msra.mxu0 0.0
    %478 = vmatprep.subr.mxu0 0.0
    %479 = vmatpush1.msra.mxu0 0.0
    %480 = vmatprep.subr.mxu0 0.0
    %481 = vmatpush1.msra.mxu0 0.0
    %482 = vmatprep.subr.mxu0 0.0
    %483 = vmatpush1.msra.mxu0 0.0
    %484 = vmatprep.subr.mxu0 0.0
    %485 = vmatpush1.msra.mxu0 0.0
    %486 = vmatprep.subr.mxu0 0.0
    %487 = vmatpush1.msra.mxu0 0.0
    %488 = vmatprep.subr.mxu0 0.0
    %489 = vmatpush1.msra.mxu0 0.0
    %490 = vmatprep.subr.mxu0 0.0
    %491 = vmatpush1.msra.mxu0 0.0
    %492 = vmatprep.subr.mxu0 0.0
    %493 = vmatpush1.msra.mxu0 0.0
    %494 = vmatprep.subr.mxu0 0.0
    %495 = vmatpush1.msra.mxu0 0.0
    %496 = vmatprep.subr.mxu0 0.0
    %497 = vmatpush1.msra.mxu0 0.0
    %498 = vmatprep.subr.mxu0 0.0
    %499 = vmatpush1.msra.mxu0 0.0
    %500 = vmatprep.subr.mxu0 0.0
    %501 = vmatpush1.msra.mxu0 0.0
    %502 = vmatprep.subr.mxu0 0.0
    %503 = vmatpush1.msra.mxu0 0.0
    %504 = vmatprep.subr.mxu0 0.0
    %505 = vmatpush1.msra.mxu0 0.0
    %506 = vmatprep.subr.mxu0 0.0
    %507 = vmatpush1.msra.mxu0 0.0
    %508 = vmatprep.subr.mxu0 0.0
    %509 = vmatpush1.msra.mxu0 0.0
    %510 = vmatprep.subr.mxu0 0.0
    %511 = vmatpush1.msra.mxu0 0.0
    %512 = vmatprep.subr.mxu0 0.0
    %513 = vmatpush1.msra.mxu0 0.0
    %514 = vmatprep.subr.mxu0 0.0
    %515 = vmatpush1.msra.mxu0 0.0
    %516 = vmatprep.subr.mxu0 0.0
    %517 = vmatpush1.msra.mxu0 0.0
    %518 = vmatprep.mubr.f32.mxu0 0.0
    %519 = vmatmul.mubr.f32.gmra.mrb[0].mxu0 %v452
    %v520 = vpop.f32.mrb[0].mxu0
    %v521 = vadd.f32 0.0, %v520
    %v522 = vpop.f32.mrb[0].mxu0
    %523 = vdwg.mxu0
    %v524 = vadd.f32 %v193, %v521
    %v525 = vtanh.pop %v524
    %v527 = vsel %vm226, %v525, 0
    %529 = vmatprep.subr.mxu0 0.0
    %530 = vmatpush1.msra.mxu0 %v222
    %531 = vmatprep.subr.mxu0 0.0
    %532 = vmatpush1.msra.mxu0 %v223
    %533 = vmatprep.subr.mxu0 0.0
    %534 = vmatpush1.msra.mxu0 %v224
    %535 = vmatprep.subr.mxu0 0.0
    %536 = vmatpush1.msra.mxu0 %v225
    %537 = vmatprep.subr.mxu0 0.0
    %538 = vmatpush1.msra.mxu0 0.0
    %539 = vmatprep.subr.mxu0 0.0
    %540 = vmatpush1.msra.mxu0 0.0
    %541 = vmatprep.subr.mxu0 0.0
    %542 = vmatpush1.msra.mxu0 0.0
    %543 = vmatprep.subr.mxu0 0.0
    %544 = vmatpush1.msra.mxu0 0.0
    %545 = vmatprep.subr.mxu0 0.0
    %546 = vmatpush1.msra.mxu0 0.0
    %547 = vmatprep.subr.mxu0 0.0
    %548 = vmatpush1.msra.mxu0 0.0
    %549 = vmatprep.subr.mxu0 0.0
    %550 = vmatpush1.msra.mxu0 0.0
    %551 = vmatprep.subr.mxu0 0.0
    %552 = vmatpush1.msra.mxu0 0.0
    %553 = vmatprep.subr.mxu0 0.0
    %554 = vmatpush1.msra.mxu0 0.0
    %555 = vmatprep.subr.mxu0 0.0
    %556 = vmatpush1.msra.mxu0 0.0
    %557 = vmatprep.subr.mxu0 0.0
    %558 = vmatpush1.msra.mxu0 0.0
    %559 = vmatprep.subr.mxu0 0.0
    %560 = vmatpush1.msra.mxu0 0.0
    %561 = vmatprep.subr.mxu0 0.0
    %562 = vmatpush1.msra.mxu0 0.0
    %563 = vmatprep.subr.mxu0 0.0
    %564 = vmatpush1.msra.mxu0 0.0
    %565 = vmatprep.subr.mxu0 0.0
    %566 = vmatpush1.msra.mxu0 0.0
    %567 = vmatprep.subr.mxu0 0.0
    %568 = vmatpush1.msra.mxu0 0.0
    %569 = vmatprep.subr.mxu0 0.0
    %570 = vmatpush1.msra.mxu0 0.0
    %571 = vmatprep.subr.mxu0 0.0
    %572 = vmatpush1.msra.mxu0 0.0
    %573 = vmatprep.subr.mxu0 0.0
    %574 = vmatpush1.msra.mxu0 0.0
    %575 = vmatprep.subr.mxu0 0.0
    %576 = vmatpush1.msra.mxu0 0.0
    %577 = vmatprep.subr.mxu0 0.0
    %578 = vmatpush1.msra.mxu0 0.0
    %579 = vmatprep.subr.mxu0 0.0
    %580 = vmatpush1.msra.mxu0 0.0
    %581 = vmatprep.subr.mxu0 0.0
    %582 = vmatpush1.msra.mxu0 0.0
    %583 = vmatprep.subr.mxu0 0.0
    %584 = vmatpush1.msra.mxu0 0.0
    %585 = vmatprep.subr.mxu0 0.0
    %586 = vmatpush1.msra.mxu0 0.0
    %587 = vmatprep.subr.mxu0 0.0
    %588 = vmatpush1.msra.mxu0 0.0
    %589 = vmatprep.subr.mxu0 0.0
    %590 = vmatpush1.msra.mxu0 0.0
    %591 = vmatprep.subr.mxu0 0.0
    %592 = vmatpush1.msra.mxu0 0.0
    %593 = vmatprep.mubr.f32.mxu0 0.0
    %594 = vmatmul.mubr.f32.gmra.mrb[0].mxu0 %v527
    %v595 = vpop.f32.mrb[0].mxu0
    %v596 = vadd.f32 0.0, %v595
    %v597 = vpop.f32.mrb[0].mxu0
    %598 = vdwg.mxu0
    %v599 = vadd.f32 %v198, %v596
    %v600 = vtanh.pop %v599
    %v602 = vsel %vm226, %v600, 0
    %604 = vmatprep.subr.mxu0 0.0
    %605 = vmatpush1.msra.mxu0 %v222
    %606 = vmatprep.subr.mxu0 0.0
    %607 = vmatpush1.msra.mxu0 %v223
    %608 = vmatprep.subr.mxu0 0.0
    %609 = vmatpush1.msra.mxu0 %v224
    %610 = vmatprep.subr.mxu0 0.0
    %611 = vmatpush1.msra.mxu0 %v225
    %612 = vmatprep.subr.mxu0 0.0
    %613 = vmatpush1.msra.mxu0 0.0
    %614 = vmatprep.subr.mxu0 0.0
    %615 = vmatpush1.msra.mxu0 0.0
    %616 = vmatprep.subr.mxu0 0.0
    %617 = vmatpush1.msra.mxu0 0.0
    %618 = vmatprep.subr.mxu0 0.0
    %619 = vmatpush1.msra.mxu0 0.0
    %620 = vmatprep.subr.mxu0 0.0
    %621 = vmatpush1.msra.mxu0 0.0
    %622 = vmatprep.subr.mxu0 0.0
    %623 = vmatpush1.msra.mxu0 0.0
    %624 = vmatprep.subr.mxu0 0.0
    %625 = vmatpush1.msra.mxu0 0.0
    %626 = vmatprep.subr.mxu0 0.0
    %627 = vmatpush1.msra.mxu0 0.0
    %628 = vmatprep.subr.mxu0 0.0
    %629 = vmatpush1.msra.mxu0 0.0
    %630 = vmatprep.subr.mxu0 0.0
    %631 = vmatpush1.msra.mxu0 0.0
    %632 = vmatprep.subr.mxu0 0.0
    %633 = vmatpush1.msra.mxu0 0.0
    %634 = vmatprep.subr.mxu0 0.0
    %635 = vmatpush1.msra.mxu0 0.0
    %636 = vmatprep.subr.mxu0 0.0
    %637 = vmatpush1.msra.mxu0 0.0
    %638 = vmatprep.subr.mxu0 0.0
    %639 = vmatpush1.msra.mxu0 0.0
    %640 = vmatprep.subr.mxu0 0.0
    %641 = vmatpush1.msra.mxu0 0.0
    %642 = vmatprep.subr.mxu0 0.0
    %643 = vmatpush1.msra.mxu0 0.0
    %644 = vmatprep.subr.mxu0 0.0
    %645 = vmatpush1.msra.mxu0 0.0
    %646 = vmatprep.subr.mxu0 0.0
    %647 = vmatpush1.msra.mxu0 0.0
    %648 = vmatprep.subr.mxu0 0.0
    %649 = vmatpush1.msra.mxu0 0.0
    %650 = vmatprep.subr.mxu0 0.0
    %651 = vmatpush1.msra.mxu0 0.0
    %652 = vmatprep.subr.mxu0 0.0
    %653 = vmatpush1.msra.mxu0 0.0
    %654 = vmatprep.subr.mxu0 0.0
    %655 = vmatpush1.msra.mxu0 0.0
    %656 = vmatprep.subr.mxu0 0.0
    %657 = vmatpush1.msra.mxu0 0.0
    %658 = vmatprep.subr.mxu0 0.0
    %659 = vmatpush1.msra.mxu0 0.0
    %660 = vmatprep.subr.mxu0 0.0
    %661 = vmatpush1.msra.mxu0 0.0
    %662 = vmatprep.subr.mxu0 0.0
    %663 = vmatpush1.msra.mxu0 0.0
    %664 = vmatprep.subr.mxu0 0.0
    %665 = vmatpush1.msra.mxu0 0.0
    %666 = vmatprep.subr.mxu0 0.0
    %667 = vmatpush1.msra.mxu0 0.0
    %668 = vmatprep.mubr.f32.mxu0 0.0
    %669 = vmatmul.mubr.f32.gmra.mrb[0].mxu0 %v602
    %v670 = vpop.f32.mrb[0].mxu0
    %v671 = vadd.f32 0.0, %v670
    %v672 = vpop.f32.mrb[0].mxu0
    %673 = vdwg.mxu0
    %v674 = vadd.f32 %v203, %v671
    %v675 = vtanh.pop %v674
    %v677 = vsel %vm226, %v675, 0
    %679 = vmatprep.subr.mxu0 0.0
    %680 = vmatpush1.msra.mxu0 %v222
    %681 = vmatprep.subr.mxu0 0.0
    %682 = vmatpush1.msra.mxu0 %v223
    %683 = vmatprep.subr.mxu0 0.0
    %684 = vmatpush1.msra.mxu0 %v224
    %685 = vmatprep.subr.mxu0 0.0
    %686 = vmatpush1.msra.mxu0 %v225
    %687 = vmatprep.subr.mxu0 0.0
    %688 = vmatpush1.msra.mxu0 0.0
    %689 = vmatprep.subr.mxu0 0.0
    %690 = vmatpush1.msra.mxu0 0.0
    %691 = vmatprep.subr.mxu0 0.0
    %692 = vmatpush1.msra.mxu0 0.0
    %693 = vmatprep.subr.mxu0 0.0
    %694 = vmatpush1.msra.mxu0 0.0
    %695 = vmatprep.subr.mxu0 0.0
    %696 = vmatpush1.msra.mxu0 0.0
    %697 = vmatprep.subr.mxu0 0.0
    %698 = vmatpush1.msra.mxu0 0.0
    %699 = vmatprep.subr.mxu0 0.0
    %700 = vmatpush1.msra.mxu0 0.0
    %701 = vmatprep.subr.mxu0 0.0
    %702 = vmatpush1.msra.mxu0 0.0
    %703 = vmatprep.subr.mxu0 0.0
    %704 = vmatpush1.msra.mxu0 0.0
    %705 = vmatprep.subr.mxu0 0.0
    %706 = vmatpush1.msra.mxu0 0.0
    %707 = vmatprep.subr.mxu0 0.0
    %708 = vmatpush1.msra.mxu0 0.0
    %709 = vmatprep.subr.mxu0 0.0
    %710 = vmatpush1.msra.mxu0 0.0
    %711 = vmatprep.subr.mxu0 0.0
    %712 = vmatpush1.msra.mxu0 0.0
    %713 = vmatprep.subr.mxu0 0.0
    %714 = vmatpush1.msra.mxu0 0.0
    %715 = vmatprep.subr.mxu0 0.0
    %716 = vmatpush1.msra.mxu0 0.0
    %717 = vmatprep.subr.mxu0 0.0
    %718 = vmatpush1.msra.mxu0 0.0
    %719 = vmatprep.subr.mxu0 0.0
    %720 = vmatpush1.msra.mxu0 0.0
    %721 = vmatprep.subr.mxu0 0.0
    %722 = vmatpush1.msra.mxu0 0.0
    %723 = vmatprep.subr.mxu0 0.0
    %724 = vmatpush1.msra.mxu0 0.0
    %725 = vmatprep.subr.mxu0 0.0
    %726 = vmatpush1.msra.mxu0 0.0
    %727 = vmatprep.subr.mxu0 0.0
    %728 = vmatpush1.msra.mxu0 0.0
    %729 = vmatprep.subr.mxu0 0.0
    %730 = vmatpush1.msra.mxu0 0.0
    %731 = vmatprep.subr.mxu0 0.0
    %732 = vmatpush1.msra.mxu0 0.0
    %733 = vmatprep.subr.mxu0 0.0
    %734 = vmatpush1.msra.mxu0 0.0
    %735 = vmatprep.subr.mxu0 0.0
    %736 = vmatpush1.msra.mxu0 0.0
    %737 = vmatprep.subr.mxu0 0.0
    %738 = vmatpush1.msra.mxu0 0.0
    %739 = vmatprep.subr.mxu0 0.0
    %740 = vmatpush1.msra.mxu0 0.0
    %741 = vmatprep.subr.mxu0 0.0
    %742 = vmatpush1.msra.mxu0 0.0
    %743 = vmatprep.mubr.f32.mxu0 0.0
    %744 = vmatmul.mubr.f32.gmra.mrb[0].mxu0 %v677
    %v745 = vpop.f32.mrb[0].mxu0
    %v746 = vadd.f32 0.0, %v745
    %v747 = vpop.f32.mrb[0].mxu0
    %748 = vdwg.mxu0
    %v749 = vadd.f32 %v208, %v746
    %v750 = vtanh.pop %v749
    %v752 = vsel %vm226, %v750, 0
    %754 = vmatprep.subr.mxu0 0.0
    %755 = vmatpush1.msra.mxu0 %v222
    %756 = vmatprep.subr.mxu0 0.0
    %757 = vmatpush1.msra.mxu0 %v223
    %758 = vmatprep.subr.mxu0 0.0
    %759 = vmatpush1.msra.mxu0 %v224
    %760 = vmatprep.subr.mxu0 0.0
    %761 = vmatpush1.msra.mxu0 %v225
    %762 = vmatprep.subr.mxu0 0.0
    %763 = vmatpush1.msra.mxu0 0.0
    %764 = vmatprep.subr.mxu0 0.0
    %765 = vmatpush1.msra.mxu0 0.0
    %766 = vmatprep.subr.mxu0 0.0
    %767 = vmatpush1.msra.mxu0 0.0
    %768 = vmatprep.subr.mxu0 0.0
    %769 = vmatpush1.msra.mxu0 0.0
    %770 = vmatprep.subr.mxu0 0.0
    %771 = vmatpush1.msra.mxu0 0.0
    %772 = vmatprep.subr.mxu0 0.0
    %773 = vmatpush1.msra.mxu0 0.0
    %774 = vmatprep.subr.mxu0 0.0
    %775 = vmatpush1.msra.mxu0 0.0
    %776 = vmatprep.subr.mxu0 0.0
    %777 = vmatpush1.msra.mxu0 0.0
    %778 = vmatprep.subr.mxu0 0.0
    %779 = vmatpush1.msra.mxu0 0.0
    %780 = vmatprep.subr.mxu0 0.0
    %781 = vmatpush1.msra.mxu0 0.0
    %782 = vmatprep.subr.mxu0 0.0
    %783 = vmatpush1.msra.mxu0 0.0
    %784 = vmatprep.subr.mxu0 0.0
    %785 = vmatpush1.msra.mxu0 0.0
    %786 = vmatprep.subr.mxu0 0.0
    %787 = vmatpush1.msra.mxu0 0.0
    %788 = vmatprep.subr.mxu0 0.0
    %789 = vmatpush1.msra.mxu0 0.0
    %790 = vmatprep.subr.mxu0 0.0
    %791 = vmatpush1.msra.mxu0 0.0
    %792 = vmatprep.subr.mxu0 0.0
    %793 = vmatpush1.msra.mxu0 0.0
    %794 = vmatprep.subr.mxu0 0.0
    %795 = vmatpush1.msra.mxu0 0.0
    %796 = vmatprep.subr.mxu0 0.0
    %797 = vmatpush1.msra.mxu0 0.0
    %798 = vmatprep.subr.mxu0 0.0
    %799 = vmatpush1.msra.mxu0 0.0
    %800 = vmatprep.subr.mxu0 0.0
    %801 = vmatpush1.msra.mxu0 0.0
    %802 = vmatprep.subr.mxu0 0.0
    %803 = vmatpush1.msra.mxu0 0.0
    %804 = vmatprep.subr.mxu0 0.0
    %805 = vmatpush1.msra.mxu0 0.0
    %806 = vmatprep.subr.mxu0 0.0
    %807 = vmatpush1.msra.mxu0 0.0
    %808 = vmatprep.subr.mxu0 0.0
    %809 = vmatpush1.msra.mxu0 0.0
    %810 = vmatprep.subr.mxu0 0.0
    %811 = vmatpush1.msra.mxu0 0.0
    %812 = vmatprep.subr.mxu0 0.0
    %813 = vmatpush1.msra.mxu0 0.0
    %814 = vmatprep.subr.mxu0 0.0
    %815 = vmatpush1.msra.mxu0 0.0
    %816 = vmatprep.subr.mxu0 0.0
    %817 = vmatpush1.msra.mxu0 0.0
    %818 = vmatprep.mubr.f32.mxu0 0.0
    %819 = vmatmul.mubr.f32.gmra.mrb[0].mxu0 %v752
    %v820 = vpop.f32.mrb[0].mxu0
    %v821 = vadd.f32 0.0, %v820
    %v822 = vpop.f32.mrb[0].mxu0
    %823 = vdwg.mxu0
    %v824 = vadd.f32 %v213, %v821
    %v825 = vtanh.pop %v824
    %v826 = vld [vmem:[%s5] sm:$0x1]
    %v828 = vlaneseq
    %v829 = vshrl.u32 %v828, 7
    %v830 = vsub.s32 0, %v829
    %v831 = vrot.slane %v826, %v830
    %v833 = vmul.f32 %v825, %v831
    %v834 = vsel %vm226, %v833, 0.0
    %835 = vadd.xlane.f32.xlu0 %v834
    %v836 = vpop.xlane.xlu0 %835
    %v837 = vld [vmem:[#allocation2] sm:$0x1]
    %v839 = vlaneseq
    %v840 = vshrl.u32 %v839, 7
    %v841 = vsub.s32 0, %v840
    %v842 = vrot.slane %v837, %v841
    %v844 = vadd.f32 %v836, %v842
    %v845 = vxor.u32 %v844, 2147483648
    %v846 = vmul.f32 %v845, 1.442695
    %v847 = vpow.pop %v846
    %v848 = vadd.f32 %v847, 1.0
    %v849 = vrcp.pop %v848
    %v850 = vmul.f32 1.0, %v849
    %vm851 = vcmask 7168
    %852 = vst.msk [vmem:[%s7] sm:$0xff] %vm851, %v850
    // Predicated region
    $region42: #{tpu_custom_call.1} parent=1 // pred_check
      _
    $region43: #{tpu_custom_call.1} parent=1 // pred_check_branch
      %854 = sbr.rel (0) target = $region45
    $region44: #{tpu_custom_call.1} parent=1 // pred_region
      _
    $region45: #{tpu_custom_call.1} parent=1 // pred_fallthru
      _
    // Predicated region
    $region46: #{tpu_custom_call.1} parent=1 // pred_check
      _
    $region47: #{tpu_custom_call.1} parent=1 // pred_check_branch
      %856 = sbr.rel (0) target = $region49
    $region48: #{tpu_custom_call.1} parent=1 // pred_region
      _
    $region49: #{tpu_custom_call.1} parent=1 // pred_fallthru
      _
    %857 = vsyncpa [#allocation4], 1
    %858 = vsyncpa [#allocation6], 1

</llo_original>
